<compile_context>
chip_gen: v5e
topology: v5e:2x2
jax: 0.10.0
libtpu: 0.0.40
codegen_flags: <defaults>
</compile_context>

<pallas_src>
import functools
from math import sqrt

import jax
import jax.numpy as jnp
from jax.experimental import pallas as pl
from jax.experimental.pallas import tpu as pltpu


# ----------------------------- model config ---------------------------------
IN_DIM = 24       # embed dim (must be divisible by num_heads=3)
OUT_DIM = 32      # feedforward hidden dim
NUM_HEADS = 3
HEAD_DIM = IN_DIM // NUM_HEADS
SEQ = 8
BATCH = 2
LN_EPS = 1e-5


def _layernorm(x, gamma, beta):
    mu = jnp.mean(x, axis=-1, keepdims=True)
    var = jnp.mean((x - mu) * (x - mu), axis=-1, keepdims=True)
    return (x - mu) * jax.lax.rsqrt(var + LN_EPS) * gamma + beta


# ------------------------------- kernel -------------------------------------
def _tb_kernel(x_ref, wqkv_ref, bqkv_ref, wo_ref, w1_ref, w2_ref, vec_ref, o_ref,
               *, num_heads, head_dim, batch, embed, ffn):
    # x_ref: (L*N, E), rows interleaved as (l0,n0),(l0,n1),(l1,n0),... so the
    # batch index of row i is i % batch.
    xf = x_ref[...].astype(jnp.float32)                 # (LN, E)
    LN = xf.shape[0]
    E = embed
    d = head_dim
    scale = 1.0 / sqrt(float(d))

    # Packed small vectors: rows = [bo, g1, be1, b1, b2, g2, be2], width 32 >= max(E, F).
    vec = vec_ref[...].astype(jnp.float32)              # (7, 32)
    bo = vec[0:1, :E]
    g1, be1 = vec[1:2, :E], vec[2:3, :E]
    b1 = vec[3:4, :ffn]
    b2 = vec[4:5, :E]
    g2, be2 = vec[5:6, :E], vec[6:7, :E]

    # Fused QKV projection: (LN, E) @ (E, 3E) + (1, 3E)
    qkv = jnp.dot(xf, wqkv_ref[...], preferred_element_type=jnp.float32) + bqkv_ref[...]

    # Additive mask that forbids attention across batch elements (built once).
    ri = jax.lax.broadcasted_iota(jnp.int32, (LN, LN), 0)
    ci = jax.lax.broadcasted_iota(jnp.int32, (LN, LN), 1)
    mask_bias = jnp.where((ri % batch) == (ci % batch),
                          jnp.float32(0.0), jnp.float32(-1e30))

    # Per-head attention on full (LN)-row tiles.  The output projection is folded
    # in per head (sublane-aligned row slices of Wo), so no lane concatenate needed.
    attn = jnp.zeros((LN, E), jnp.float32) + bo
    for h in range(num_heads):
        qh = qkv[:, h * d:(h + 1) * d]                  # (LN, d)
        kh = qkv[:, E + h * d:E + (h + 1) * d]          # (LN, d)
        vh = qkv[:, 2 * E + h * d:2 * E + (h + 1) * d]  # (LN, d)
        s = jax.lax.dot_general(qh, kh, (((1,), (1,)), ((), ())),
                                preferred_element_type=jnp.float32)
        s = s * scale + mask_bias                       # (LN, LN)
        s = s - jnp.max(s, axis=-1, keepdims=True)
        p = jnp.exp(s)
        denom = jnp.sum(p, axis=-1, keepdims=True)      # (LN, 1)
        hout = jnp.dot(p, vh, preferred_element_type=jnp.float32)  # (LN, d)
        hout = hout * pl.reciprocal(denom)              # normalize (LN, d), not (LN, LN)
        attn = attn + jnp.dot(hout, wo_ref[h * d:(h + 1) * d, :],
                              preferred_element_type=jnp.float32)

    # residual + LayerNorm 1
    x1 = _layernorm(xf + attn, g1, be1)

    # Feedforward: Linear -> ReLU -> Linear
    h1 = jnp.dot(x1, w1_ref[...], preferred_element_type=jnp.float32) + b1
    h1 = jnp.maximum(h1, 0.0)
    ff = jnp.dot(h1, w2_ref[...], preferred_element_type=jnp.float32) + b2

    # residual + LayerNorm 2
    x2 = _layernorm(x1 + ff, g2, be2)
    o_ref[...] = x2.astype(o_ref.dtype)


# ------------------------------- wrapper -------------------------------------
@functools.partial(jax.jit, static_argnames=("num_heads",))
def transformer_block(x, params, num_heads=NUM_HEADS):
    """x: (L, N, E) float32, PyTorch seq-first layout. Returns (L, N, E)."""
    L, N, E = x.shape
    F = params["w1"].shape[1]
    d = E // num_heads
    LN = L * N

    xf = x.reshape(LN, E)                               # bitcast reshape, no transpose

    kernel = functools.partial(_tb_kernel, num_heads=num_heads, head_dim=d,
                               batch=N, embed=E, ffn=F)
    full = lambda shape: pl.BlockSpec(shape, lambda i: (0,) * len(shape))

    out = pl.pallas_call(
        kernel,
        out_shape=jax.ShapeDtypeStruct((LN, E), x.dtype),
        grid=(1,),
        in_specs=[
            full((LN, E)),                              # x (flattened)
            full((E, 3 * E)),                           # W_qkv
            full((1, 3 * E)),                           # b_qkv
            full((E, E)),                               # W_o^T
            full((E, F)),                               # W1^T
            full((F, E)),                               # W2^T
            full(params["vecs"].shape),                 # packed small vectors
        ],
        out_specs=full((LN, E)),
        compiler_params=pltpu.CompilerParams(
            dimension_semantics=("arbitrary",)),
    )(xf, params["wqkv"], params["bqkv"], params["wo"],
      params["w1"], params["w2"], params["vecs"])

    return out.reshape(L, N, E)


# -------------------------- parameter construction ---------------------------
def make_params(key, in_dim=IN_DIM, out_dim=OUT_DIM, num_heads=NUM_HEADS):
    E, F = in_dim, out_dim
    ks = jax.random.split(key, 8)
    s = 0.1
    # nn.MultiheadAttention: in_proj_weight (3E, E), in_proj_bias (3E,)
    in_proj_w = jax.random.normal(ks[0], (3 * E, E), jnp.float32) * s
    in_proj_b = jax.random.normal(ks[1], (3 * E,), jnp.float32) * s
    out_proj_w = jax.random.normal(ks[2], (E, E), jnp.float32) * s
    out_proj_b = jax.random.normal(ks[3], (E,), jnp.float32) * s
    # feedforward linears (PyTorch Linear stores (out, in))
    w1 = jax.random.normal(ks[4], (F, E), jnp.float32) * s
    b1 = jax.random.normal(ks[5], (F,), jnp.float32) * s
    w2 = jax.random.normal(ks[6], (E, F), jnp.float32) * s
    b2 = jax.random.normal(ks[7], (E,), jnp.float32) * s
    # layer norms: weight=1, bias=0 (PyTorch default init)
    g1 = jnp.ones((E,), jnp.float32)
    be1 = jnp.zeros((E,), jnp.float32)
    g2 = jnp.ones((E,), jnp.float32)
    be2 = jnp.zeros((E,), jnp.float32)

    wq, wk, wv = in_proj_w[:E], in_proj_w[E:2 * E], in_proj_w[2 * E:]
    bq, bk, bv = in_proj_b[:E], in_proj_b[E:2 * E], in_proj_b[2 * E:]

    raw = dict(wq=wq, wk=wk, wv=wv, bq=bq, bk=bk, bv=bv,
               wo=out_proj_w, bo=out_proj_b,
               w1=w1, b1=b1, w2=w2, b2=b2,
               g1=g1, be1=be1, g2=g2, be2=be2)

    # Kernel-friendly packing: fused QKV weight/bias, pre-transposed linears,
    # and a single slab for all the small bias / LayerNorm vectors.
    W = max(E, F)  # 32

    def row(v):
        return jnp.pad(v, (0, W - v.shape[0])).reshape(1, W)

    vecs = jnp.concatenate([row(out_proj_b), row(g1), row(be1),
                            row(b1), row(b2), row(g2), row(be2)], axis=0)  # (7, 32)

    kern = dict(
        wqkv=in_proj_w.T,                    # (E, 3E)  columns = [q | k | v]
        bqkv=in_proj_b.reshape(1, 3 * E),    # (1, 3E)
        wo=out_proj_w.T,                     # (E, E)
        w1=w1.T,                             # (E, F)
        w2=w2.T,                             # (F, E)
        vecs=vecs.astype(jnp.float32),       # (7, 32)
    )
    return raw, kern


# ------------------------------ pure-JAX ref ----------------------------------
def ref_block(x, p, num_heads=NUM_HEADS):
    L, N, E = x.shape
    d = E // num_heads
    q = x @ p["wq"].T + p["bq"]
    k = x @ p["wk"].T + p["bk"]
    v = x @ p["wv"].T + p["bv"]
    q = q.reshape(L, N, num_heads, d)
    k = k.reshape(L, N, num_heads, d)
    v = v.reshape(L, N, num_heads, d)
    s = jnp.einsum("lnhd,mnhd->nhlm", q, k) / sqrt(float(d))
    a = jax.nn.softmax(s, axis=-1)
    o = jnp.einsum("nhlm,mnhd->lnhd", a, v).reshape(L, N, E)
    att = o @ p["wo"].T + p["bo"]
    x = _layernorm(x + att, p["g1"], p["be1"])
    ff = jnp.maximum(x @ p["w1"].T + p["b1"], 0.0) @ p["w2"].T + p["b2"]
    x = _layernorm(x + ff, p["g2"], p["be2"])
    return x


# --------------------------------- main ---------------------------------------
if __name__ == "__main__":
    key = jax.random.PRNGKey(0)
    kx, kp = jax.random.split(key)
    x = jax.random.normal(kx, (SEQ, BATCH, IN_DIM), jnp.float32)  # (L, N, E)
    raw_params, kern_params = make_params(kp)

    out = transformer_block(x, kern_params)
    out = jax.block_until_ready(out)

    ref = ref_block(x, raw_params)
    assert out.shape == (SEQ, BATCH, IN_DIM)
    assert jnp.allclose(out, ref, atol=2e-3, rtol=2e-3), (
        float(jnp.max(jnp.abs(out - ref))))

    print("KERNEL_OK")
</pallas_src>

<mosaic_0001>
module attributes {stable_mosaic.version = 11 : i64} {
  func.func @_tb_kernel(%arg0: i32, %arg1: memref<16x24xf32, #tpu.memory_space<vmem>>, %arg2: memref<24x72xf32, #tpu.memory_space<vmem>>, %arg3: memref<1x72xf32, #tpu.memory_space<vmem>>, %arg4: memref<24x24xf32, #tpu.memory_space<vmem>>, %arg5: memref<24x32xf32, #tpu.memory_space<vmem>>, %arg6: memref<32x24xf32, #tpu.memory_space<vmem>>, %arg7: memref<7x32xf32, #tpu.memory_space<vmem>>, %arg8: memref<16x24xf32, #tpu.memory_space<vmem>>) attributes {dimension_semantics = [#tpu.dimension_semantics<arbitrary>], iteration_bounds = array<i64: 1>, scalar_prefetch = 0 : i64, scratch_operands = 0 : i64, tpu.core_type = #tpu.core_type<tc>, window_params = [{pipeline_mode = #tpu.pipeline_mode<synchronous>, transform_indices = @transform_0, window_bounds = array<i64: 16, 24>}, {pipeline_mode = #tpu.pipeline_mode<synchronous>, transform_indices = @transform_1, window_bounds = array<i64: 24, 72>}, {pipeline_mode = #tpu.pipeline_mode<synchronous>, transform_indices = @transform_2, window_bounds = array<i64: 1, 72>}, {pipeline_mode = #tpu.pipeline_mode<synchronous>, transform_indices = @transform_3, window_bounds = array<i64: 24, 24>}, {pipeline_mode = #tpu.pipeline_mode<synchronous>, transform_indices = @transform_4, window_bounds = array<i64: 24, 32>}, {pipeline_mode = #tpu.pipeline_mode<synchronous>, transform_indices = @transform_5, window_bounds = array<i64: 32, 24>}, {pipeline_mode = #tpu.pipeline_mode<synchronous>, transform_indices = @transform_6, window_bounds = array<i64: 7, 32>}, {pipeline_mode = #tpu.pipeline_mode<synchronous>, transform_indices = @transform_7, window_bounds = array<i64: 16, 24>}]} {
    %c0 = arith.constant 0 : index
    %c0_0 = arith.constant 0 : index
    %0 = vector.load %arg1[%c0, %c0_0] : memref<16x24xf32, #tpu.memory_space<vmem>>, vector<16x24xf32>
    %c0_1 = arith.constant 0 : index
    %c0_2 = arith.constant 0 : index
    %1 = vector.load %arg7[%c0_1, %c0_2] : memref<7x32xf32, #tpu.memory_space<vmem>>, vector<7x32xf32>
    %2 = vector.extract_strided_slice %1 {offsets = [0, 0], sizes = [1, 24], strides = [1, 1]} : vector<7x32xf32> to vector<1x24xf32>
    %3 = vector.extract_strided_slice %1 {offsets = [1, 0], sizes = [1, 24], strides = [1, 1]} : vector<7x32xf32> to vector<1x24xf32>
    %4 = vector.extract_strided_slice %1 {offsets = [2, 0], sizes = [1, 24], strides = [1, 1]} : vector<7x32xf32> to vector<1x24xf32>
    %5 = vector.extract_strided_slice %1 {offsets = [3, 0], sizes = [1, 32], strides = [1, 1]} : vector<7x32xf32> to vector<1x32xf32>
    %6 = vector.extract_strided_slice %1 {offsets = [4, 0], sizes = [1, 24], strides = [1, 1]} : vector<7x32xf32> to vector<1x24xf32>
    %7 = vector.extract_strided_slice %1 {offsets = [5, 0], sizes = [1, 24], strides = [1, 1]} : vector<7x32xf32> to vector<1x24xf32>
    %8 = vector.extract_strided_slice %1 {offsets = [6, 0], sizes = [1, 24], strides = [1, 1]} : vector<7x32xf32> to vector<1x24xf32>
    %c0_3 = arith.constant 0 : index
    %c0_4 = arith.constant 0 : index
    %9 = vector.load %arg2[%c0_3, %c0_4] : memref<24x72xf32, #tpu.memory_space<vmem>>, vector<24x72xf32>
    %cst = arith.constant dense<0.000000e+00> : vector<16x72xf32>
    %10 = tpu.matmul %0, %9, %cst {dimension_numbers = #tpu.dot_dimension_numbers<[1], [0], [0], [1], [0, 0, 1, 1], [], []>} : vector<16x24xf32>, vector<24x72xf32>, vector<16x72xf32> -> vector<16x72xf32>
    %c0_5 = arith.constant 0 : index
    %c0_6 = arith.constant 0 : index
    %11 = vector.load %arg3[%c0_5, %c0_6] : memref<1x72xf32, #tpu.memory_space<vmem>>, vector<1x72xf32>
    %12 = vector.broadcast %11 : vector<1x72xf32> to vector<16x72xf32>
    %13 = arith.addf %10, %12 : vector<16x72xf32>
    %14 = tpu.iota {dimensions = array<i32: 0>} : vector<16x16xi32>
    %15 = tpu.iota {dimensions = array<i32: 1>} : vector<16x16xi32>
    %c2_i32 = arith.constant 2 : i32
    %c0_i32 = arith.constant 0 : i32
    %16 = arith.cmpi eq, %c2_i32, %c0_i32 : i32
    %c1_i32 = arith.constant 1 : i32
    %17 = arith.select %16, %c1_i32, %c2_i32 : i32
    %18 = vector.broadcast %17 : i32 to vector<16x16xi32>
    %19 = arith.remsi %14, %18 : vector<16x16xi32>
    %c0_i32_7 = arith.constant 0 : i32
    %20 = vector.broadcast %c0_i32_7 : i32 to vector<16x16xi32>
    %21 = arith.cmpi ne, %19, %20 : vector<16x16xi32>
    %c0_i32_8 = arith.constant 0 : i32
    %22 = vector.broadcast %c0_i32_8 : i32 to vector<16x16xi32>
    %23 = arith.cmpi slt, %19, %22 : vector<16x16xi32>
    %c0_i32_9 = arith.constant 0 : i32
    %24 = arith.cmpi slt, %17, %c0_i32_9 : i32
    %25 = vector.broadcast %24 : i1 to vector<16x16xi1>
    %26 = vector.broadcast %25 : vector<16x16xi1> to vector<16x16xi1>
    %27 = arith.xori %23, %26 : vector<16x16xi1>
    %28 = arith.andi %27, %21 : vector<16x16xi1>
    %29 = vector.broadcast %17 : i32 to vector<16x16xi32>
    %30 = arith.addi %19, %29 : vector<16x16xi32>
    %31 = arith.select %28, %30, %19 : vector<16x16xi1>, vector<16x16xi32>
    %c2_i32_10 = arith.constant 2 : i32
    %c0_i32_11 = arith.constant 0 : i32
    %32 = arith.cmpi eq, %c2_i32_10, %c0_i32_11 : i32
    %c1_i32_12 = arith.constant 1 : i32
    %33 = arith.select %32, %c1_i32_12, %c2_i32_10 : i32
    %34 = vector.broadcast %33 : i32 to vector<16x16xi32>
    %35 = arith.remsi %15, %34 : vector<16x16xi32>
    %c0_i32_13 = arith.constant 0 : i32
    %36 = vector.broadcast %c0_i32_13 : i32 to vector<16x16xi32>
    %37 = arith.cmpi ne, %35, %36 : vector<16x16xi32>
    %c0_i32_14 = arith.constant 0 : i32
    %38 = vector.broadcast %c0_i32_14 : i32 to vector<16x16xi32>
    %39 = arith.cmpi slt, %35, %38 : vector<16x16xi32>
    %c0_i32_15 = arith.constant 0 : i32
    %40 = arith.cmpi slt, %33, %c0_i32_15 : i32
    %41 = vector.broadcast %40 : i1 to vector<16x16xi1>
    %42 = vector.broadcast %41 : vector<16x16xi1> to vector<16x16xi1>
    %43 = arith.xori %39, %42 : vector<16x16xi1>
    %44 = arith.andi %43, %37 : vector<16x16xi1>
    %45 = vector.broadcast %33 : i32 to vector<16x16xi32>
    %46 = arith.addi %35, %45 : vector<16x16xi32>
    %47 = arith.select %44, %46, %35 : vector<16x16xi1>, vector<16x16xi32>
    %48 = arith.cmpi eq, %31, %47 : vector<16x16xi32>
    %cst_16 = arith.constant 0.000000e+00 : f32
    %cst_17 = arith.constant -1.000000e+30 : f32
    %49 = vector.broadcast %cst_16 : f32 to vector<16x16xf32>
    %50 = vector.broadcast %cst_17 : f32 to vector<16x16xf32>
    %51 = arith.select %48, %49, %50 : vector<16x16xi1>, vector<16x16xf32>
    %cst_18 = arith.constant 0.000000e+00 : f32
    %52 = vector.broadcast %cst_18 : f32 to vector<16x24xf32>
    %53 = vector.broadcast %2 : vector<1x24xf32> to vector<16x24xf32>
    %54 = arith.addf %52, %53 : vector<16x24xf32>
    %55 = vector.extract_strided_slice %13 {offsets = [0, 0], sizes = [16, 8], strides = [1, 1]} : vector<16x72xf32> to vector<16x8xf32>
    %56 = vector.extract_strided_slice %13 {offsets = [0, 24], sizes = [16, 8], strides = [1, 1]} : vector<16x72xf32> to vector<16x8xf32>
    %57 = vector.extract_strided_slice %13 {offsets = [0, 48], sizes = [16, 8], strides = [1, 1]} : vector<16x72xf32> to vector<16x8xf32>
    %cst_19 = arith.constant dense<0.000000e+00> : vector<16x16xf32>
    %58 = tpu.matmul %55, %56, %cst_19 {dimension_numbers = #tpu.dot_dimension_numbers<[1], [1], [0], [0], [0, 0, 1, 0], [], []>} : vector<16x8xf32>, vector<16x8xf32>, vector<16x16xf32> -> vector<16x16xf32>
    %cst_20 = arith.constant 0.353553385 : f32
    %59 = vector.broadcast %cst_20 : f32 to vector<16x16xf32>
    %60 = arith.mulf %58, %59 : vector<16x16xf32>
    %61 = arith.addf %60, %51 : vector<16x16xf32>
    %cst_21 = arith.constant dense<0xFF800000> : vector<16xf32>
    %62 = vector.multi_reduction <maximumf>, %61, %cst_21 [1] : vector<16x16xf32> to vector<16xf32>
    %63 = vector.shape_cast %62 : vector<16xf32> to vector<16x1xf32>
    %64 = vector.broadcast %63 : vector<16x1xf32> to vector<16x16xf32>
    %65 = arith.subf %61, %64 : vector<16x16xf32>
    %66 = math.exp %65 : vector<16x16xf32>
    %cst_22 = arith.constant dense<0.000000e+00> : vector<16xf32>
    %67 = vector.multi_reduction <add>, %66, %cst_22 [1] : vector<16x16xf32> to vector<16xf32>
    %68 = vector.shape_cast %67 : vector<16xf32> to vector<16x1xf32>
    %cst_23 = arith.constant dense<0.000000e+00> : vector<16x8xf32>
    %69 = tpu.matmul %66, %57, %cst_23 {dimension_numbers = #tpu.dot_dimension_numbers<[1], [0], [0], [1], [0, 0, 1, 1], [], []>} : vector<16x16xf32>, vector<16x8xf32>, vector<16x8xf32> -> vector<16x8xf32>
    %70 = tpu.reciprocal %68 : vector<16x1xf32> -> vector<16x1xf32>
    %71 = vector.broadcast %70 : vector<16x1xf32> to vector<16x8xf32>
    %72 = arith.mulf %69, %71 : vector<16x8xf32>
    %c0_24 = arith.constant 0 : index
    %c0_25 = arith.constant 0 : index
    %73 = vector.load %arg4[%c0_24, %c0_25] : memref<24x24xf32, #tpu.memory_space<vmem>>, vector<8x24xf32>
    %cst_26 = arith.constant dense<0.000000e+00> : vector<16x24xf32>
    %74 = tpu.matmul %72, %73, %cst_26 {dimension_numbers = #tpu.dot_dimension_numbers<[1], [0], [0], [1], [0, 0, 1, 1], [], []>} : vector<16x8xf32>, vector<8x24xf32>, vector<16x24xf32> -> vector<16x24xf32>
    %75 = arith.addf %54, %74 : vector<16x24xf32>
    %76 = vector.extract_strided_slice %13 {offsets = [0, 8], sizes = [16, 8], strides = [1, 1]} : vector<16x72xf32> to vector<16x8xf32>
    %77 = vector.extract_strided_slice %13 {offsets = [0, 32], sizes = [16, 8], strides = [1, 1]} : vector<16x72xf32> to vector<16x8xf32>
    %78 = vector.extract_strided_slice %13 {offsets = [0, 56], sizes = [16, 8], strides = [1, 1]} : vector<16x72xf32> to vector<16x8xf32>
    %cst_27 = arith.constant dense<0.000000e+00> : vector<16x16xf32>
    %79 = tpu.matmul %76, %77, %cst_27 {dimension_numbers = #tpu.dot_dimension_numbers<[1], [1], [0], [0], [0, 0, 1, 0], [], []>} : vector<16x8xf32>, vector<16x8xf32>, vector<16x16xf32> -> vector<16x16xf32>
    %cst_28 = arith.constant 0.353553385 : f32
    %80 = vector.broadcast %cst_28 : f32 to vector<16x16xf32>
    %81 = arith.mulf %79, %80 : vector<16x16xf32>
    %82 = arith.addf %81, %51 : vector<16x16xf32>
    %cst_29 = arith.constant dense<0xFF800000> : vector<16xf32>
    %83 = vector.multi_reduction <maximumf>, %82, %cst_29 [1] : vector<16x16xf32> to vector<16xf32>
    %84 = vector.shape_cast %83 : vector<16xf32> to vector<16x1xf32>
    %85 = vector.broadcast %84 : vector<16x1xf32> to vector<16x16xf32>
    %86 = arith.subf %82, %85 : vector<16x16xf32>
    %87 = math.exp %86 : vector<16x16xf32>
    %cst_30 = arith.constant dense<0.000000e+00> : vector<16xf32>
    %88 = vector.multi_reduction <add>, %87, %cst_30 [1] : vector<16x16xf32> to vector<16xf32>
    %89 = vector.shape_cast %88 : vector<16xf32> to vector<16x1xf32>
    %cst_31 = arith.constant dense<0.000000e+00> : vector<16x8xf32>
    %90 = tpu.matmul %87, %78, %cst_31 {dimension_numbers = #tpu.dot_dimension_numbers<[1], [0], [0], [1], [0, 0, 1, 1], [], []>} : vector<16x16xf32>, vector<16x8xf32>, vector<16x8xf32> -> vector<16x8xf32>
    %91 = tpu.reciprocal %89 : vector<16x1xf32> -> vector<16x1xf32>
    %92 = vector.broadcast %91 : vector<16x1xf32> to vector<16x8xf32>
    %93 = arith.mulf %90, %92 : vector<16x8xf32>
    %c8 = arith.constant 8 : index
    %c0_32 = arith.constant 0 : index
    %94 = vector.load %arg4[%c8, %c0_32] : memref<24x24xf32, #tpu.memory_space<vmem>>, vector<8x24xf32>
    %cst_33 = arith.constant dense<0.000000e+00> : vector<16x24xf32>
    %95 = tpu.matmul %93, %94, %cst_33 {dimension_numbers = #tpu.dot_dimension_numbers<[1], [0], [0], [1], [0, 0, 1, 1], [], []>} : vector<16x8xf32>, vector<8x24xf32>, vector<16x24xf32> -> vector<16x24xf32>
    %96 = arith.addf %75, %95 : vector<16x24xf32>
    %97 = vector.extract_strided_slice %13 {offsets = [0, 16], sizes = [16, 8], strides = [1, 1]} : vector<16x72xf32> to vector<16x8xf32>
    %98 = vector.extract_strided_slice %13 {offsets = [0, 40], sizes = [16, 8], strides = [1, 1]} : vector<16x72xf32> to vector<16x8xf32>
    %99 = vector.extract_strided_slice %13 {offsets = [0, 64], sizes = [16, 8], strides = [1, 1]} : vector<16x72xf32> to vector<16x8xf32>
    %cst_34 = arith.constant dense<0.000000e+00> : vector<16x16xf32>
    %100 = tpu.matmul %97, %98, %cst_34 {dimension_numbers = #tpu.dot_dimension_numbers<[1], [1], [0], [0], [0, 0, 1, 0], [], []>} : vector<16x8xf32>, vector<16x8xf32>, vector<16x16xf32> -> vector<16x16xf32>
    %cst_35 = arith.constant 0.353553385 : f32
    %101 = vector.broadcast %cst_35 : f32 to vector<16x16xf32>
    %102 = arith.mulf %100, %101 : vector<16x16xf32>
    %103 = arith.addf %102, %51 : vector<16x16xf32>
    %cst_36 = arith.constant dense<0xFF800000> : vector<16xf32>
    %104 = vector.multi_reduction <maximumf>, %103, %cst_36 [1] : vector<16x16xf32> to vector<16xf32>
    %105 = vector.shape_cast %104 : vector<16xf32> to vector<16x1xf32>
    %106 = vector.broadcast %105 : vector<16x1xf32> to vector<16x16xf32>
    %107 = arith.subf %103, %106 : vector<16x16xf32>
    %108 = math.exp %107 : vector<16x16xf32>
    %cst_37 = arith.constant dense<0.000000e+00> : vector<16xf32>
    %109 = vector.multi_reduction <add>, %108, %cst_37 [1] : vector<16x16xf32> to vector<16xf32>
    %110 = vector.shape_cast %109 : vector<16xf32> to vector<16x1xf32>
    %cst_38 = arith.constant dense<0.000000e+00> : vector<16x8xf32>
    %111 = tpu.matmul %108, %99, %cst_38 {dimension_numbers = #tpu.dot_dimension_numbers<[1], [0], [0], [1], [0, 0, 1, 1], [], []>} : vector<16x16xf32>, vector<16x8xf32>, vector<16x8xf32> -> vector<16x8xf32>
    %112 = tpu.reciprocal %110 : vector<16x1xf32> -> vector<16x1xf32>
    %113 = vector.broadcast %112 : vector<16x1xf32> to vector<16x8xf32>
    %114 = arith.mulf %111, %113 : vector<16x8xf32>
    %c16 = arith.constant 16 : index
    %c0_39 = arith.constant 0 : index
    %115 = vector.load %arg4[%c16, %c0_39] : memref<24x24xf32, #tpu.memory_space<vmem>>, vector<8x24xf32>
    %cst_40 = arith.constant dense<0.000000e+00> : vector<16x24xf32>
    %116 = tpu.matmul %114, %115, %cst_40 {dimension_numbers = #tpu.dot_dimension_numbers<[1], [0], [0], [1], [0, 0, 1, 1], [], []>} : vector<16x8xf32>, vector<8x24xf32>, vector<16x24xf32> -> vector<16x24xf32>
    %117 = arith.addf %96, %116 : vector<16x24xf32>
    %118 = arith.addf %0, %117 : vector<16x24xf32>
    %cst_41 = arith.constant dense<0.000000e+00> : vector<16xf32>
    %119 = vector.multi_reduction <add>, %118, %cst_41 [1] : vector<16x24xf32> to vector<16xf32>
    %120 = vector.shape_cast %119 : vector<16xf32> to vector<16x1xf32>
    %cst_42 = arith.constant 2.400000e+01 : f32
    %121 = vector.broadcast %cst_42 : f32 to vector<16x1xf32>
    %122 = arith.divf %120, %121 : vector<16x1xf32>
    %123 = vector.broadcast %122 : vector<16x1xf32> to vector<16x24xf32>
    %124 = arith.subf %118, %123 : vector<16x24xf32>
    %125 = vector.broadcast %122 : vector<16x1xf32> to vector<16x24xf32>
    %126 = arith.subf %118, %125 : vector<16x24xf32>
    %127 = arith.mulf %124, %126 : vector<16x24xf32>
    %cst_43 = arith.constant dense<0.000000e+00> : vector<16xf32>
    %128 = vector.multi_reduction <add>, %127, %cst_43 [1] : vector<16x24xf32> to vector<16xf32>
    %129 = vector.shape_cast %128 : vector<16xf32> to vector<16x1xf32>
    %cst_44 = arith.constant 2.400000e+01 : f32
    %130 = vector.broadcast %cst_44 : f32 to vector<16x1xf32>
    %131 = arith.divf %129, %130 : vector<16x1xf32>
    %132 = vector.broadcast %122 : vector<16x1xf32> to vector<16x24xf32>
    %133 = arith.subf %118, %132 : vector<16x24xf32>
    %cst_45 = arith.constant 9.99999974E-6 : f32
    %134 = vector.broadcast %cst_45 : f32 to vector<16x1xf32>
    %135 = arith.addf %131, %134 : vector<16x1xf32>
    %136 = math.rsqrt %135 : vector<16x1xf32>
    %137 = vector.broadcast %136 : vector<16x1xf32> to vector<16x24xf32>
    %138 = arith.mulf %133, %137 : vector<16x24xf32>
    %139 = vector.broadcast %3 : vector<1x24xf32> to vector<16x24xf32>
    %140 = arith.mulf %138, %139 : vector<16x24xf32>
    %141 = vector.broadcast %4 : vector<1x24xf32> to vector<16x24xf32>
    %142 = arith.addf %140, %141 : vector<16x24xf32>
    %c0_46 = arith.constant 0 : index
    %c0_47 = arith.constant 0 : index
    %143 = vector.load %arg5[%c0_46, %c0_47] : memref<24x32xf32, #tpu.memory_space<vmem>>, vector<24x32xf32>
    %cst_48 = arith.constant dense<0.000000e+00> : vector<16x32xf32>
    %144 = tpu.matmul %142, %143, %cst_48 {dimension_numbers = #tpu.dot_dimension_numbers<[1], [0], [0], [1], [0, 0, 1, 1], [], []>} : vector<16x24xf32>, vector<24x32xf32>, vector<16x32xf32> -> vector<16x32xf32>
    %145 = vector.broadcast %5 : vector<1x32xf32> to vector<16x32xf32>
    %146 = arith.addf %144, %145 : vector<16x32xf32>
    %cst_49 = arith.constant 0.000000e+00 : f32
    %147 = vector.broadcast %cst_49 : f32 to vector<16x32xf32>
    %148 = arith.maximumf %146, %147 : vector<16x32xf32>
    %c0_50 = arith.constant 0 : index
    %c0_51 = arith.constant 0 : index
    %149 = vector.load %arg6[%c0_50, %c0_51] : memref<32x24xf32, #tpu.memory_space<vmem>>, vector<32x24xf32>
    %cst_52 = arith.constant dense<0.000000e+00> : vector<16x24xf32>
    %150 = tpu.matmul %148, %149, %cst_52 {dimension_numbers = #tpu.dot_dimension_numbers<[1], [0], [0], [1], [0, 0, 1, 1], [], []>} : vector<16x32xf32>, vector<32x24xf32>, vector<16x24xf32> -> vector<16x24xf32>
    %151 = vector.broadcast %6 : vector<1x24xf32> to vector<16x24xf32>
    %152 = arith.addf %150, %151 : vector<16x24xf32>
    %153 = arith.addf %142, %152 : vector<16x24xf32>
    %cst_53 = arith.constant dense<0.000000e+00> : vector<16xf32>
    %154 = vector.multi_reduction <add>, %153, %cst_53 [1] : vector<16x24xf32> to vector<16xf32>
    %155 = vector.shape_cast %154 : vector<16xf32> to vector<16x1xf32>
    %cst_54 = arith.constant 2.400000e+01 : f32
    %156 = vector.broadcast %cst_54 : f32 to vector<16x1xf32>
    %157 = arith.divf %155, %156 : vector<16x1xf32>
    %158 = vector.broadcast %157 : vector<16x1xf32> to vector<16x24xf32>
    %159 = arith.subf %153, %158 : vector<16x24xf32>
    %160 = vector.broadcast %157 : vector<16x1xf32> to vector<16x24xf32>
    %161 = arith.subf %153, %160 : vector<16x24xf32>
    %162 = arith.mulf %159, %161 : vector<16x24xf32>
    %cst_55 = arith.constant dense<0.000000e+00> : vector<16xf32>
    %163 = vector.multi_reduction <add>, %162, %cst_55 [1] : vector<16x24xf32> to vector<16xf32>
    %164 = vector.shape_cast %163 : vector<16xf32> to vector<16x1xf32>
    %cst_56 = arith.constant 2.400000e+01 : f32
    %165 = vector.broadcast %cst_56 : f32 to vector<16x1xf32>
    %166 = arith.divf %164, %165 : vector<16x1xf32>
    %167 = vector.broadcast %157 : vector<16x1xf32> to vector<16x24xf32>
    %168 = arith.subf %153, %167 : vector<16x24xf32>
    %cst_57 = arith.constant 9.99999974E-6 : f32
    %169 = vector.broadcast %cst_57 : f32 to vector<16x1xf32>
    %170 = arith.addf %166, %169 : vector<16x1xf32>
    %171 = math.rsqrt %170 : vector<16x1xf32>
    %172 = vector.broadcast %171 : vector<16x1xf32> to vector<16x24xf32>
    %173 = arith.mulf %168, %172 : vector<16x24xf32>
    %174 = vector.broadcast %7 : vector<1x24xf32> to vector<16x24xf32>
    %175 = arith.mulf %173, %174 : vector<16x24xf32>
    %176 = vector.broadcast %8 : vector<1x24xf32> to vector<16x24xf32>
    %177 = arith.addf %175, %176 : vector<16x24xf32>
    %c0_58 = arith.constant 0 : index
    %c0_59 = arith.constant 0 : index
    %178 = vector.load %arg8[%c0_58, %c0_59] : memref<16x24xf32, #tpu.memory_space<vmem>>, vector<16x24xf32>
    tpu.vector_store %arg8[%c0_58, %c0_59], %177 {strides = array<i32>} : memref<16x24xf32, #tpu.memory_space<vmem>>, vector<16x24xf32>,
    return
  }
  func.func @transform_0(%arg0: i32) -> (i32, i32) {
    %c0_i32 = arith.constant 0 : i32
    %c0_i32_0 = arith.constant 0 : i32
    %c0_i32_1 = arith.constant 0 : i32
    return %c0_i32, %c0_i32_0 : i32, i32
  }
  func.func @transform_1(%arg0: i32) -> (i32, i32) {
    %c0_i32 = arith.constant 0 : i32
    %c0_i32_0 = arith.constant 0 : i32
    %c0_i32_1 = arith.constant 0 : i32
    return %c0_i32, %c0_i32_0 : i32, i32
  }
  func.func @transform_2(%arg0: i32) -> (i32, i32) {
    %c0_i32 = arith.constant 0 : i32
    %c0_i32_0 = arith.constant 0 : i32
    %c0_i32_1 = arith.constant 0 : i32
    return %c0_i32, %c0_i32_0 : i32, i32
  }
  func.func @transform_3(%arg0: i32) -> (i32, i32) {
    %c0_i32 = arith.constant 0 : i32
    %c0_i32_0 = arith.constant 0 : i32
    %c0_i32_1 = arith.constant 0 : i32
    return %c0_i32, %c0_i32_0 : i32, i32
  }
  func.func @transform_4(%arg0: i32) -> (i32, i32) {
    %c0_i32 = arith.constant 0 : i32
    %c0_i32_0 = arith.constant 0 : i32
    %c0_i32_1 = arith.constant 0 : i32
    return %c0_i32, %c0_i32_0 : i32, i32
  }
  func.func @transform_5(%arg0: i32) -> (i32, i32) {
    %c0_i32 = arith.constant 0 : i32
    %c0_i32_0 = arith.constant 0 : i32
    %c0_i32_1 = arith.constant 0 : i32
    return %c0_i32, %c0_i32_0 : i32, i32
  }
  func.func @transform_6(%arg0: i32) -> (i32, i32) {
    %c0_i32 = arith.constant 0 : i32
    %c0_i32_0 = arith.constant 0 : i32
    %c0_i32_1 = arith.constant 0 : i32
    return %c0_i32, %c0_i32_0 : i32, i32
  }
  func.func @transform_7(%arg0: i32) -> (i32, i32) {
    %c0_i32 = arith.constant 0 : i32
    %c0_i32_0 = arith.constant 0 : i32
    %c0_i32_1 = arith.constant 0 : i32
    return %c0_i32, %c0_i32_0 : i32, i32
  }
}

</mosaic_0001>

<llo_original>
// kernel: transformer_block.1
$region0: #{transformer_block.1}
  #allocation0 [shape = 'u32[]', space=smem, size = 0x4, offset = 0x4, fixed_abs, tag = 'smem constant byte address 0x4 - core index']
  #allocation1 [shape = 'u32[72,128]{1,0:T(1,128)}', space=vmem, size = 0x9000, scoped, tag = 'internal scratch']
  %s0 = inlined_call_operand.hbm [shape: f32[16,24], index: 0, kind: input, shape index: {}]
  %s1 = inlined_call_operand.vmem [shape: f32[24,72], index: 1, kind: input, shape index: {}]
  %s2 = inlined_call_operand.vmem [shape: f32[1,72], index: 2, kind: input, shape index: {}]
  %s3 = inlined_call_operand.vmem [shape: f32[24,24], index: 3, kind: input, shape index: {}]
  %s4 = inlined_call_operand.hbm [shape: f32[24,32], index: 4, kind: input, shape index: {}]
  %s5 = inlined_call_operand.vmem [shape: f32[32,24], index: 5, kind: input, shape index: {}]
  %s6 = inlined_call_operand.vmem [shape: f32[7,32], index: 6, kind: input, shape index: {}]
  %s7 = inlined_call_operand.hbm [shape: f32[16,24], index: 7, kind: output, shape index: {}]
  %s8 = sld [smem:[#allocation0]]
  $region46: #{transformer_block.1} parent=0
    _
  %s10 = ssub.s32 1, %s8
  %s11 = scalar_select 0, %s10, %s8
  $region1: #{transformer_block.1} parent=0
    #allocation2 [shape = 'u8[8192]{0}', space=vmem, size = 0x2000, scoped, tag = 'input window, operand 0, single buffered']
    #allocation3 [shape = 's32[1]{0}', space=sflag, size = 0x4, scoped, tag = 'scoped memory for transformer_block.1']
    #allocation4 [shape = 's32[1]{0}', space=sflag, size = 0x4, scoped, tag = 'scoped memory for transformer_block.1']
    #allocation5 [shape = 'u8[12288]{0}', space=vmem, size = 0x3000, scoped, tag = 'input window, operand 4, single buffered']
    #allocation6 [shape = 's32[1]{0}', space=sflag, size = 0x4, scoped, tag = 'scoped memory for transformer_block.1']
    #allocation7 [shape = 'u8[8192]{0}', space=vmem, size = 0x2000, scoped, tag = 'output window, operand 0, single buffered']
    %12 = vsyncpa [#allocation3], 0
    %13 = vsyncpa [#allocation6], 0
    %14 = vsyncpa [#allocation4], 0
    // Predicated region
    $region2: #{transformer_block.1} parent=1 // pred_check
      _
    $region3: #{transformer_block.1} parent=1 // pred_check_branch
      %16 = sbr.rel (0) target = $region5
    $region4: #{transformer_block.1} parent=1 // pred_region
      %18 = vsyncadd [#allocation3], 0
      %s19 = sshll.u32 %s0, 4
      %s20 = int_to_ptr.hbm [resolvable:$true] %s19
      %s21 = sshll.u32 [#allocation2], 4
      %s22 = int_to_ptr.vmem [resolvable:$true] %s21
      %27 = dma.hbm_to_vmem [thread:$0]  %s20, 256, %s22, [#allocation3], 128, 128, 8
    $region5: #{transformer_block.1} parent=1 // pred_fallthru
      _
    // Predicated region
    $region6: #{transformer_block.1} parent=1 // pred_check
      _
    $region7: #{transformer_block.1} parent=1 // pred_check_branch
      %29 = sbr.rel (0) target = $region9
    $region8: #{transformer_block.1} parent=1 // pred_region
      _
    $region9: #{transformer_block.1} parent=1 // pred_fallthru
      _
    // Predicated region
    $region10: #{transformer_block.1} parent=1 // pred_check
      _
    $region11: #{transformer_block.1} parent=1 // pred_check_branch
      %31 = sbr.rel (0) target = $region13
    $region12: #{transformer_block.1} parent=1 // pred_region
      _
    $region13: #{transformer_block.1} parent=1 // pred_fallthru
      _
    // Predicated region
    $region14: #{transformer_block.1} parent=1 // pred_check
      _
    $region15: #{transformer_block.1} parent=1 // pred_check_branch
      %33 = sbr.rel (0) target = $region17
    $region16: #{transformer_block.1} parent=1 // pred_region
      _
    $region17: #{transformer_block.1} parent=1 // pred_fallthru
      _
    // Predicated region
    $region18: #{transformer_block.1} parent=1 // pred_check
      _
    $region19: #{transformer_block.1} parent=1 // pred_check_branch
      %35 = sbr.rel (0) target = $region21
    $region20: #{transformer_block.1} parent=1 // pred_region
      %37 = vsyncadd [#allocation6], 0
      %s38 = sshll.u32 %s4, 4
      %s39 = int_to_ptr.hbm [resolvable:$true] %s38
      %s40 = sshll.u32 [#allocation5], 4
      %s41 = int_to_ptr.vmem [resolvable:$true] %s40
      %46 = dma.hbm_to_vmem [thread:$0]  %s39, 384, %s41, [#allocation6], 128, 128, 8
    $region21: #{transformer_block.1} parent=1 // pred_fallthru
      _
    // Predicated region
    $region22: #{transformer_block.1} parent=1 // pred_check
      _
    $region23: #{transformer_block.1} parent=1 // pred_check_branch
      %48 = sbr.rel (0) target = $region25
    $region24: #{transformer_block.1} parent=1 // pred_region
      _
    $region25: #{transformer_block.1} parent=1 // pred_fallthru
      _
    // Predicated region
    $region26: #{transformer_block.1} parent=1 // pred_check
      _
    $region27: #{transformer_block.1} parent=1 // pred_check_branch
      %50 = sbr.rel (0) target = $region29
    $region28: #{transformer_block.1} parent=1 // pred_region
      _
    $region29: #{transformer_block.1} parent=1 // pred_fallthru
      _
    // Predicated region
    $region30: #{transformer_block.1} parent=1 // pred_check
      _
    $region31: #{transformer_block.1} parent=1 // pred_check_branch
      %52 = sbr.rel (0) target = $region33
    $region32: #{transformer_block.1} parent=1 // pred_region
      %54 = dma.done [#allocation3], 256
    $region33: #{transformer_block.1} parent=1 // pred_fallthru
      _
    // Predicated region
    $region34: #{transformer_block.1} parent=1 // pred_check
      _
    $region35: #{transformer_block.1} parent=1 // pred_check_branch
      %56 = sbr.rel (0) target = $region37
    $region36: #{transformer_block.1} parent=1 // pred_region
      %58 = dma.done [#allocation6], 384
    $region37: #{transformer_block.1} parent=1 // pred_fallthru
      _
    %v59 = vld [vmem:[#allocation2] sm:$0xff]
    %v60 = vld [vmem:[#allocation2 + $0x8] sm:$0xff]
    %v61 = vld [vmem:[%s6] sm:$0x7f]
    %v62 = vld [vmem:[%s1] sm:$0xff]
    %v63 = vld [vmem:[%s1 + $0x8] sm:$0xff]
    %v64 = vld [vmem:[%s1 + $0x10] sm:$0xff]
    %v65 = vld [vmem:[%s2] sm:$0x1]
    %v67 = vperm.slane %v65, 0
    %vm69 = vcmask 195584
    %v71 = vsel %vm69, %v59, 0
    %v74 = vsel %vm69, %v60, 0
    %76 = vmatpush.msra.mxu0 0.0
    %77 = vmatpush.msra.mxu0 0.0
    %78 = vmatpush.msra.mxu0 0.0
    %79 = vmatpush.msra.mxu0 0.0
    %80 = vmatpush.msra.mxu0 0.0
    %81 = vmatpush.msra.mxu0 0.0
    %82 = vmatpush.msra.mxu0 0.0
    %83 = vmatpush.msra.mxu0 0.0
    %84 = vmatpush.msra.mxu0 0.0
    %85 = vmatpush.msra.mxu0 0.0
    %86 = vmatpush.msra.mxu0 0.0
    %87 = vmatpush.msra.mxu0 0.0
    %88 = vmatpush.msra.mxu0 0.0
    %89 = vmatpush.msra.mxu0 %v64
    %90 = vmatpush.msra.mxu0 %v63
    %91 = vmatpush.msra.mxu0 %v62
    %92 = vmatmul.f32.gmra.mxu0 %v71
    %v93 = vpop.f32.mrf.mxu0
    %v94 = vadd.f32 %v67, %v93
    %95 = vmatmul.f32.gmra.mxu0 %v74
    %v96 = vpop.f32.mrf.mxu0
    %v97 = vadd.f32 %v67, %v96
    %98 = vdwg.mxu0
    %v99 = vlaneseq
    %v100 = vshrl.u32 %v99, 7
    %v101 = vadd.s32 %v100, 8
    %v102 = vlaneseq
    %v103 = vand.u32 %v102, 127
    %vm104 = vcmp.lt.s32.totalorder %v100, 0
    %v105 = vsub.s32 0, %v100
    %v106 = vsel %vm104, %v105, %v100
    %v107 = vshrl.u32 %v106, 1
    %v108 = vand.u32 %v106, 1
    %v109 = vsub.s32 0, %v108
    %v110 = vsel %vm104, %v109, %v108
    %vm111 = vcmp.lt.s32.totalorder %v101, 0
    %v112 = vsub.s32 0, %v101
    %v113 = vsel %vm111, %v112, %v101
    %v114 = vshrl.u32 %v113, 1
    %v115 = vand.u32 %v113, 1
    %v116 = vsub.s32 0, %v115
    %v117 = vsel %vm111, %v116, %v115
    %vm118 = vcmp.ne.s32.totalorder %v110, 0
    %vm119 = vcmp.ne.s32.totalorder %v117, 0
    %vm120 = vcmp.lt.s32.totalorder %v110, 0
    %vm121 = vcmp.lt.s32.totalorder %v117, 0
    %vm122 = vmand %vm120, %vm118
    %vm123 = vmand %vm121, %vm119
    %v124 = vadd.s32 %v110, 2
    %v125 = vadd.s32 %v117, 2
    %v126 = vsel %vm122, %v124, %v110
    %v127 = vsel %vm123, %v125, %v117
    %vm128 = vcmp.lt.s32.totalorder %v103, 0
    %v129 = vsub.s32 0, %v103
    %v130 = vsel %vm128, %v129, %v103
    %v131 = vshrl.u32 %v130, 1
    %v132 = vand.u32 %v130, 1
    %v133 = vsub.s32 0, %v132
    %v134 = vsel %vm128, %v133, %v132
    %vm135 = vcmp.ne.s32.totalorder %v134, 0
    %vm136 = vcmp.lt.s32.totalorder %v134, 0
    %vm137 = vmand %vm136, %vm135
    %v138 = vadd.s32 %v134, 2
    %v139 = vsel %vm137, %v138, %v134
    %vm140 = vcmp.eq.s32.totalorder %v126, %v139
    %vm141 = vcmp.eq.s32.totalorder %v127, %v139
    %v142 = vsel %vm140, 0.0, -1e+30
    %v143 = vsel %vm141, 0.0, -1e+30
    %v144 = vperm.slane %v61, 0
    %v145 = vadd.f32 %v144, 0.0
    %148 = vrot.lane.b32.xlu0 %v94, 104
    %v149 = vpop.permute.xlu0 %148
    %150 = vrot.lane.b32.xlu0 %v97, 104
    %v151 = vpop.permute.xlu0 %150
    %vm152 = vcmask 64512
    %v153 = vsel %vm152, %v94, 0
    %v155 = vsel %vm152, %v97, 0
    %v157 = vsel %vm152, %v149, 0
    %v159 = vsel %vm152, %v151, 0
    %161 = vmatpush.xpose.msra.mxu0 0.0
    %162 = vmatpush.xpose.msra.mxu0 0.0
    %163 = vmatpush.xpose.msra.mxu0 0.0
    %164 = vmatpush.xpose.msra.mxu0 0.0
    %165 = vmatpush.xpose.msra.mxu0 0.0
    %166 = vmatpush.xpose.msra.mxu0 0.0
    %167 = vmatpush.xpose.msra.mxu0 0.0
    %168 = vmatpush.xpose.msra.mxu0 0.0
    %169 = vmatpush.xpose.msra.mxu0 0.0
    %170 = vmatpush.xpose.msra.mxu0 0.0
    %171 = vmatpush.xpose.msra.mxu0 0.0
    %172 = vmatpush.xpose.msra.mxu0 0.0
    %173 = vmatpush.xpose.msra.mxu0 0.0
    %174 = vmatpush.xpose.msra.mxu0 0.0
    %175 = vmatpush.xpose.msra.mxu0 %v159
    %176 = vmatpush.xpose.msra.mxu0 %v157
    %177 = vmatmul.f32.gmra.mxu0 %v153
    %v178 = vpop.f32.mrf.mxu0
    %v179 = vadd.f32 0.0, %v178
    %180 = vmatmul.f32.gmra.mxu0 %v155
    %v181 = vpop.f32.mrf.mxu0
    %v182 = vadd.f32 0.0, %v181
    %183 = vdwg.mxu0
    %v184 = vmul.f32 %v179, 0.35355338
    %v185 = vmul.f32 %v182, 0.35355338
    %v186 = vadd.f32 %v184, %v142
    %v187 = vadd.f32 %v185, %v143
    %vm188 = vcmask 130048
    %v189 = vsel %vm188, %v186, -inf
    %190 = vmax.xlane.f32.xlu0 %v189
    %v191 = vpop.xlane.xlu0 %190
    %v192 = vsel %vm188, %v187, -inf
    %193 = vmax.xlane.f32.xlu0 %v192
    %v194 = vpop.xlane.xlu0 %193
    %v195 = vsub.f32 %v186, %v191
    %v196 = vsub.f32 %v187, %v194
    %v197 = vmul.f32 %v195, 1.442695
    %v198 = vpow.pop %v197
    %v199 = vmul.f32 %v196, 1.442695
    %v200 = vpow.pop %v199
    %v201 = vsel %vm188, %v198, 0.0
    %202 = vadd.xlane.f32.xlu0 %v201
    %v203 = vpop.xlane.xlu0 %202
    %v204 = vsel %vm188, %v200, 0.0
    %205 = vadd.xlane.f32.xlu0 %v204
    %v206 = vpop.xlane.xlu0 %205
    %207 = vrot.lane.b32.xlu0 %v94, 80
    %v208 = vpop.permute.xlu0 %207
    %209 = vrot.lane.b32.xlu0 %v97, 80
    %v210 = vpop.permute.xlu0 %209
    %v214 = vsel %vm188, %v198, 0
    %v217 = vsel %vm188, %v200, 0
    %219 = vmatpush.msra.mxu0 0.0
    %220 = vmatpush.msra.mxu0 0.0
    %221 = vmatpush.msra.mxu0 0.0
    %222 = vmatpush.msra.mxu0 0.0
    %223 = vmatpush.msra.mxu0 0.0
    %224 = vmatpush.msra.mxu0 0.0
    %225 = vmatpush.msra.mxu0 0.0
    %226 = vmatpush.msra.mxu0 0.0
    %227 = vmatpush.msra.mxu0 0.0
    %228 = vmatpush.msra.mxu0 0.0
    %229 = vmatpush.msra.mxu0 0.0
    %230 = vmatpush.msra.mxu0 0.0
    %231 = vmatpush.msra.mxu0 0.0
    %232 = vmatpush.msra.mxu0 0.0
    %233 = vmatpush.msra.mxu0 %v210
    %234 = vmatpush.msra.mxu0 %v208
    %235 = vmatmul.f32.gmra.mxu0 %v214
    %v236 = vpop.f32.mrf.mxu0
    %v237 = vadd.f32 0.0, %v236
    %238 = vmatmul.f32.gmra.mxu0 %v217
    %v239 = vpop.f32.mrf.mxu0
    %v240 = vadd.f32 0.0, %v239
    %241 = vdwg.mxu0
    %v242 = vrcp.pop %v203
    %v243 = vmul.f32 %v203, %v242
    %v244 = vsub.f32 1.0, %v243
    %v245 = vmul.f32 %v242, %v244
    %v246 = vadd.f32 %v242, %v245
    %vm247 = vweird.f32 %v203
    %vm248 = vweird.f32 %v242
    %vm249 = vmor %vm247, %vm248
    %v250 = vsel %vm249, %v242, %v246
    %v251 = vand.u32 2147483647, %v203
    %vm252 = vcmp.eq.f32.partialorder %v251, 8.507059e+37
    %v253 = vand.u32 %v203, 2147483648
    %v254 = vor.u32 1.1754944e-38, %v253
    %v255 = vsel %vm252, %v254, %v250
    %v256 = vrcp.pop %v206
    %v257 = vmul.f32 %v206, %v256
    %v258 = vsub.f32 1.0, %v257
    %v259 = vmul.f32 %v256, %v258
    %v260 = vadd.f32 %v256, %v259
    %vm261 = vweird.f32 %v206
    %vm262 = vweird.f32 %v256
    %vm263 = vmor %vm261, %vm262
    %v264 = vsel %vm263, %v256, %v260
    %v265 = vand.u32 2147483647, %v206
    %vm266 = vcmp.eq.f32.partialorder %v265, 8.507059e+37
    %v267 = vand.u32 %v206, 2147483648
    %v268 = vor.u32 1.1754944e-38, %v267
    %v269 = vsel %vm266, %v268, %v264
    %v270 = vmul.f32 %v237, %v255
    %v271 = vmul.f32 %v240, %v269
    %v272 = vld [vmem:[%s3] sm:$0xff]
    %v274 = vsel %vm152, %v270, 0
    %v277 = vsel %vm152, %v271, 0
    %279 = vmatpush.msra.mxu0 0.0
    %280 = vmatpush.msra.mxu0 0.0
    %281 = vmatpush.msra.mxu0 0.0
    %282 = vmatpush.msra.mxu0 0.0
    %283 = vmatpush.msra.mxu0 0.0
    %284 = vmatpush.msra.mxu0 0.0
    %285 = vmatpush.msra.mxu0 0.0
    %286 = vmatpush.msra.mxu0 0.0
    %287 = vmatpush.msra.mxu0 0.0
    %288 = vmatpush.msra.mxu0 0.0
    %289 = vmatpush.msra.mxu0 0.0
    %290 = vmatpush.msra.mxu0 0.0
    %291 = vmatpush.msra.mxu0 0.0
    %292 = vmatpush.msra.mxu0 0.0
    %293 = vmatpush.msra.mxu0 0.0
    %294 = vmatpush.msra.mxu0 %v272
    %295 = vmatmul.f32.gmra.mxu0 %v274
    %v296 = vpop.f32.mrf.mxu0
    %v297 = vadd.f32 0.0, %v296
    %298 = vmatmul.f32.gmra.mxu0 %v277
    %v299 = vpop.f32.mrf.mxu0
    %v300 = vadd.f32 0.0, %v299
    %301 = vdwg.mxu0
    %v302 = vadd.f32 %v145, %v297
    %v303 = vadd.f32 %v145, %v300
    %304 = vrot.lane.b32.xlu0 %v94, 120
    %v305 = vpop.permute.xlu0 %304
    %306 = vrot.lane.b32.xlu0 %v97, 120
    %v307 = vpop.permute.xlu0 %306
    %308 = vrot.lane.b32.xlu0 %v94, 96
    %v309 = vpop.permute.xlu0 %308
    %310 = vrot.lane.b32.xlu0 %v97, 96
    %v311 = vpop.permute.xlu0 %310
    %v312 = vsel %vm152, %v305, 0
    %v314 = vsel %vm152, %v307, 0
    %v316 = vsel %vm152, %v309, 0
    %v318 = vsel %vm152, %v311, 0
    %320 = vmatpush.xpose.msra.mxu0 0.0
    %321 = vmatpush.xpose.msra.mxu0 0.0
    %322 = vmatpush.xpose.msra.mxu0 0.0
    %323 = vmatpush.xpose.msra.mxu0 0.0
    %324 = vmatpush.xpose.msra.mxu0 0.0
    %325 = vmatpush.xpose.msra.mxu0 0.0
    %326 = vmatpush.xpose.msra.mxu0 0.0
    %327 = vmatpush.xpose.msra.mxu0 0.0
    %328 = vmatpush.xpose.msra.mxu0 0.0
    %329 = vmatpush.xpose.msra.mxu0 0.0
    %330 = vmatpush.xpose.msra.mxu0 0.0
    %331 = vmatpush.xpose.msra.mxu0 0.0
    %332 = vmatpush.xpose.msra.mxu0 0.0
    %333 = vmatpush.xpose.msra.mxu0 0.0
    %334 = vmatpush.xpose.msra.mxu0 %v318
    %335 = vmatpush.xpose.msra.mxu0 %v316
    %336 = vmatmul.f32.gmra.mxu0 %v312
    %v337 = vpop.f32.mrf.mxu0
    %v338 = vadd.f32 0.0, %v337
    %339 = vmatmul.f32.gmra.mxu0 %v314
    %v340 = vpop.f32.mrf.mxu0
    %v341 = vadd.f32 0.0, %v340
    %342 = vdwg.mxu0
    %v343 = vmul.f32 %v338, 0.35355338
    %v344 = vmul.f32 %v341, 0.35355338
    %v345 = vadd.f32 %v343, %v142
    %v346 = vadd.f32 %v344, %v143
    %v347 = vsel %vm188, %v345, -inf
    %348 = vmax.xlane.f32.xlu0 %v347
    %v349 = vpop.xlane.xlu0 %348
    %v350 = vsel %vm188, %v346, -inf
    %351 = vmax.xlane.f32.xlu0 %v350
    %v352 = vpop.xlane.xlu0 %351
    %v353 = vsub.f32 %v345, %v349
    %v354 = vsub.f32 %v346, %v352
    %v355 = vmul.f32 %v353, 1.442695
    %v356 = vpow.pop %v355
    %v357 = vmul.f32 %v354, 1.442695
    %v358 = vpow.pop %v357
    %v359 = vsel %vm188, %v356, 0.0
    %360 = vadd.xlane.f32.xlu0 %v359
    %v361 = vpop.xlane.xlu0 %360
    %v362 = vsel %vm188, %v358, 0.0
    %363 = vadd.xlane.f32.xlu0 %v362
    %v364 = vpop.xlane.xlu0 %363
    %365 = vrot.lane.b32.xlu0 %v94, 72
    %v366 = vpop.permute.xlu0 %365
    %367 = vrot.lane.b32.xlu0 %v97, 72
    %v368 = vpop.permute.xlu0 %367
    %v372 = vsel %vm188, %v356, 0
    %v375 = vsel %vm188, %v358, 0
    %377 = vmatpush.msra.mxu0 0.0
    %378 = vmatpush.msra.mxu0 0.0
    %379 = vmatpush.msra.mxu0 0.0
    %380 = vmatpush.msra.mxu0 0.0
    %381 = vmatpush.msra.mxu0 0.0
    %382 = vmatpush.msra.mxu0 0.0
    %383 = vmatpush.msra.mxu0 0.0
    %384 = vmatpush.msra.mxu0 0.0
    %385 = vmatpush.msra.mxu0 0.0
    %386 = vmatpush.msra.mxu0 0.0
    %387 = vmatpush.msra.mxu0 0.0
    %388 = vmatpush.msra.mxu0 0.0
    %389 = vmatpush.msra.mxu0 0.0
    %390 = vmatpush.msra.mxu0 0.0
    %391 = vmatpush.msra.mxu0 %v368
    %392 = vmatpush.msra.mxu0 %v366
    %393 = vmatmul.f32.gmra.mxu0 %v372
    %v394 = vpop.f32.mrf.mxu0
    %v395 = vadd.f32 0.0, %v394
    %396 = vmatmul.f32.gmra.mxu0 %v375
    %v397 = vpop.f32.mrf.mxu0
    %v398 = vadd.f32 0.0, %v397
    %399 = vdwg.mxu0
    %v400 = vrcp.pop %v361
    %v401 = vmul.f32 %v361, %v400
    %v402 = vsub.f32 1.0, %v401
    %v403 = vmul.f32 %v400, %v402
    %v404 = vadd.f32 %v400, %v403
    %vm405 = vweird.f32 %v361
    %vm406 = vweird.f32 %v400
    %vm407 = vmor %vm405, %vm406
    %v408 = vsel %vm407, %v400, %v404
    %v409 = vand.u32 2147483647, %v361
    %vm410 = vcmp.eq.f32.partialorder %v409, 8.507059e+37
    %v411 = vand.u32 %v361, 2147483648
    %v412 = vor.u32 1.1754944e-38, %v411
    %v413 = vsel %vm410, %v412, %v408
    %v414 = vrcp.pop %v364
    %v415 = vmul.f32 %v364, %v414
    %v416 = vsub.f32 1.0, %v415
    %v417 = vmul.f32 %v414, %v416
    %v418 = vadd.f32 %v414, %v417
    %vm419 = vweird.f32 %v364
    %vm420 = vweird.f32 %v414
    %vm421 = vmor %vm419, %vm420
    %v422 = vsel %vm421, %v414, %v418
    %v423 = vand.u32 2147483647, %v364
    %vm424 = vcmp.eq.f32.partialorder %v423, 8.507059e+37
    %v425 = vand.u32 %v364, 2147483648
    %v426 = vor.u32 1.1754944e-38, %v425
    %v427 = vsel %vm424, %v426, %v422
    %v428 = vmul.f32 %v395, %v413
    %v429 = vmul.f32 %v398, %v427
    %v430 = vld [vmem:[%s3 + $0x8] sm:$0xff]
    %v432 = vsel %vm152, %v428, 0
    %v435 = vsel %vm152, %v429, 0
    %437 = vmatpush.msra.mxu0 0.0
    %438 = vmatpush.msra.mxu0 0.0
    %439 = vmatpush.msra.mxu0 0.0
    %440 = vmatpush.msra.mxu0 0.0
    %441 = vmatpush.msra.mxu0 0.0
    %442 = vmatpush.msra.mxu0 0.0
    %443 = vmatpush.msra.mxu0 0.0
    %444 = vmatpush.msra.mxu0 0.0
    %445 = vmatpush.msra.mxu0 0.0
    %446 = vmatpush.msra.mxu0 0.0
    %447 = vmatpush.msra.mxu0 0.0
    %448 = vmatpush.msra.mxu0 0.0
    %449 = vmatpush.msra.mxu0 0.0
    %450 = vmatpush.msra.mxu0 0.0
    %451 = vmatpush.msra.mxu0 0.0
    %452 = vmatpush.msra.mxu0 %v430
    %453 = vmatmul.f32.gmra.mxu0 %v432
    %v454 = vpop.f32.mrf.mxu0
    %v455 = vadd.f32 0.0, %v454
    %456 = vmatmul.f32.gmra.mxu0 %v435
    %v457 = vpop.f32.mrf.mxu0
    %v458 = vadd.f32 0.0, %v457
    %459 = vdwg.mxu0
    %v460 = vadd.f32 %v302, %v455
    %v461 = vadd.f32 %v303, %v458
    %462 = vrot.lane.b32.xlu0 %v94, 112
    %v463 = vpop.permute.xlu0 %462
    %464 = vrot.lane.b32.xlu0 %v97, 112
    %v465 = vpop.permute.xlu0 %464
    %466 = vrot.lane.b32.xlu0 %v94, 88
    %v467 = vpop.permute.xlu0 %466
    %468 = vrot.lane.b32.xlu0 %v97, 88
    %v469 = vpop.permute.xlu0 %468
    %v470 = vsel %vm152, %v463, 0
    %v472 = vsel %vm152, %v465, 0
    %v474 = vsel %vm152, %v467, 0
    %v476 = vsel %vm152, %v469, 0
    %478 = vmatpush.xpose.msra.mxu0 0.0
    %479 = vmatpush.xpose.msra.mxu0 0.0
    %480 = vmatpush.xpose.msra.mxu0 0.0
    %481 = vmatpush.xpose.msra.mxu0 0.0
    %482 = vmatpush.xpose.msra.mxu0 0.0
    %483 = vmatpush.xpose.msra.mxu0 0.0
    %484 = vmatpush.xpose.msra.mxu0 0.0
    %485 = vmatpush.xpose.msra.mxu0 0.0
    %486 = vmatpush.xpose.msra.mxu0 0.0
    %487 = vmatpush.xpose.msra.mxu0 0.0
    %488 = vmatpush.xpose.msra.mxu0 0.0
    %489 = vmatpush.xpose.msra.mxu0 0.0
    %490 = vmatpush.xpose.msra.mxu0 0.0
    %491 = vmatpush.xpose.msra.mxu0 0.0
    %492 = vmatpush.xpose.msra.mxu0 %v476
    %493 = vmatpush.xpose.msra.mxu0 %v474
    %494 = vmatmul.f32.gmra.mxu0 %v470
    %v495 = vpop.f32.mrf.mxu0
    %v496 = vadd.f32 0.0, %v495
    %497 = vmatmul.f32.gmra.mxu0 %v472
    %v498 = vpop.f32.mrf.mxu0
    %v499 = vadd.f32 0.0, %v498
    %500 = vdwg.mxu0
    %v501 = vmul.f32 %v496, 0.35355338
    %v502 = vmul.f32 %v499, 0.35355338
    %v503 = vadd.f32 %v501, %v142
    %v504 = vadd.f32 %v502, %v143
    %v505 = vsel %vm188, %v503, -inf
    %506 = vmax.xlane.f32.xlu0 %v505
    %v507 = vpop.xlane.xlu0 %506
    %v508 = vsel %vm188, %v504, -inf
    %509 = vmax.xlane.f32.xlu0 %v508
    %v510 = vpop.xlane.xlu0 %509
    %v511 = vsub.f32 %v503, %v507
    %v512 = vsub.f32 %v504, %v510
    %v513 = vmul.f32 %v511, 1.442695
    %v514 = vpow.pop %v513
    %v515 = vmul.f32 %v512, 1.442695
    %v516 = vpow.pop %v515
    %v517 = vsel %vm188, %v514, 0.0
    %518 = vadd.xlane.f32.xlu0 %v517
    %v519 = vpop.xlane.xlu0 %518
    %v520 = vsel %vm188, %v516, 0.0
    %521 = vadd.xlane.f32.xlu0 %v520
    %v522 = vpop.xlane.xlu0 %521
    %523 = vrot.lane.b32.xlu0 %v94, 64
    %v524 = vpop.permute.xlu0 %523
    %525 = vrot.lane.b32.xlu0 %v97, 64
    %v526 = vpop.permute.xlu0 %525
    %v530 = vsel %vm188, %v514, 0
    %v533 = vsel %vm188, %v516, 0
    %535 = vmatpush.msra.mxu0 0.0
    %536 = vmatpush.msra.mxu0 0.0
    %537 = vmatpush.msra.mxu0 0.0
    %538 = vmatpush.msra.mxu0 0.0
    %539 = vmatpush.msra.mxu0 0.0
    %540 = vmatpush.msra.mxu0 0.0
    %541 = vmatpush.msra.mxu0 0.0
    %542 = vmatpush.msra.mxu0 0.0
    %543 = vmatpush.msra.mxu0 0.0
    %544 = vmatpush.msra.mxu0 0.0
    %545 = vmatpush.msra.mxu0 0.0
    %546 = vmatpush.msra.mxu0 0.0
    %547 = vmatpush.msra.mxu0 0.0
    %548 = vmatpush.msra.mxu0 0.0
    %549 = vmatpush.msra.mxu0 %v526
    %550 = vmatpush.msra.mxu0 %v524
    %551 = vmatmul.f32.gmra.mxu0 %v530
    %v552 = vpop.f32.mrf.mxu0
    %v553 = vadd.f32 0.0, %v552
    %554 = vmatmul.f32.gmra.mxu0 %v533
    %v555 = vpop.f32.mrf.mxu0
    %v556 = vadd.f32 0.0, %v555
    %557 = vdwg.mxu0
    %v558 = vrcp.pop %v519
    %v559 = vmul.f32 %v519, %v558
    %v560 = vsub.f32 1.0, %v559
    %v561 = vmul.f32 %v558, %v560
    %v562 = vadd.f32 %v558, %v561
    %vm563 = vweird.f32 %v519
    %vm564 = vweird.f32 %v558
    %vm565 = vmor %vm563, %vm564
    %v566 = vsel %vm565, %v558, %v562
    %v567 = vand.u32 2147483647, %v519
    %vm568 = vcmp.eq.f32.partialorder %v567, 8.507059e+37
    %v569 = vand.u32 %v519, 2147483648
    %v570 = vor.u32 1.1754944e-38, %v569
    %v571 = vsel %vm568, %v570, %v566
    %v572 = vrcp.pop %v522
    %v573 = vmul.f32 %v522, %v572
    %v574 = vsub.f32 1.0, %v573
    %v575 = vmul.f32 %v572, %v574
    %v576 = vadd.f32 %v572, %v575
    %vm577 = vweird.f32 %v522
    %vm578 = vweird.f32 %v572
    %vm579 = vmor %vm577, %vm578
    %v580 = vsel %vm579, %v572, %v576
    %v581 = vand.u32 2147483647, %v522
    %vm582 = vcmp.eq.f32.partialorder %v581, 8.507059e+37
    %v583 = vand.u32 %v522, 2147483648
    %v584 = vor.u32 1.1754944e-38, %v583
    %v585 = vsel %vm582, %v584, %v580
    %v586 = vmul.f32 %v553, %v571
    %v587 = vmul.f32 %v556, %v585
    %v588 = vld [vmem:[%s3 + $0x10] sm:$0xff]
    %v590 = vsel %vm152, %v586, 0
    %v593 = vsel %vm152, %v587, 0
    %595 = vmatpush.msra.mxu0 0.0
    %596 = vmatpush.msra.mxu0 0.0
    %597 = vmatpush.msra.mxu0 0.0
    %598 = vmatpush.msra.mxu0 0.0
    %599 = vmatpush.msra.mxu0 0.0
    %600 = vmatpush.msra.mxu0 0.0
    %601 = vmatpush.msra.mxu0 0.0
    %602 = vmatpush.msra.mxu0 0.0
    %603 = vmatpush.msra.mxu0 0.0
    %604 = vmatpush.msra.mxu0 0.0
    %605 = vmatpush.msra.mxu0 0.0
    %606 = vmatpush.msra.mxu0 0.0
    %607 = vmatpush.msra.mxu0 0.0
    %608 = vmatpush.msra.mxu0 0.0
    %609 = vmatpush.msra.mxu0 0.0
    %610 = vmatpush.msra.mxu0 %v588
    %611 = vmatmul.f32.gmra.mxu0 %v590
    %v612 = vpop.f32.mrf.mxu0
    %v613 = vadd.f32 0.0, %v612
    %614 = vmatmul.f32.gmra.mxu0 %v593
    %v615 = vpop.f32.mrf.mxu0
    %v616 = vadd.f32 0.0, %v615
    %617 = vdwg.mxu0
    %v618 = vadd.f32 %v460, %v613
    %v619 = vadd.f32 %v461, %v616
    %v620 = vadd.f32 %v59, %v618
    %v621 = vadd.f32 %v60, %v619
    %v622 = vsel %vm69, %v620, 0.0
    %623 = vadd.xlane.f32.xlu0 %v622
    %v624 = vpop.xlane.xlu0 %623
    %v625 = vsel %vm69, %v621, 0.0
    %626 = vadd.xlane.f32.xlu0 %v625
    %v627 = vpop.xlane.xlu0 %626
    %v628 = vrcp.pop 24.0
    %v629 = vmul.f32 24.0, %v628
    %v630 = vsub.f32 1.0, %v629
    %v631 = vmul.f32 %v628, %v630
    %v632 = vadd.f32 %v628, %v631
    %vm633 = vweird.f32 %v628
    %v634 = vsel %vm633, %v628, %v632
    %v635 = vmul.f32 %v624, %v634
    %v636 = vmul.f32 %v627, %v634
    %v637 = vsub.f32 %v620, %v635
    %v638 = vsub.f32 %v621, %v636
    %v639 = vmul.f32 %v637, %v637
    %v640 = vmul.f32 %v638, %v638
    %v641 = vsel %vm69, %v639, 0.0
    %642 = vadd.xlane.f32.xlu0 %v641
    %v643 = vpop.xlane.xlu0 %642
    %v644 = vsel %vm69, %v640, 0.0
    %645 = vadd.xlane.f32.xlu0 %v644
    %v646 = vpop.xlane.xlu0 %645
    %v647 = vmul.f32 %v643, %v634
    %v648 = vmul.f32 %v646, %v634
    %v649 = vadd.f32 %v647, 1e-05
    %v650 = vadd.f32 %v648, 1e-05
    %v651 = vrsqrt.pop %v649
    %v652 = vmul.f32 %v651, %v649
    %v653 = vmul.f32 %v652, %v651
    %v654 = vmul.f32 0.5, %v653
    %v655 = vsub.f32 1.5, %v654
    %v656 = vmul.f32 %v651, %v655
    %vm657 = vweird.f32 %v649
    %vm658 = vweird.f32 %v651
    %vm659 = vmor %vm657, %vm658
    %v660 = vsel %vm659, %v651, %v656
    %v661 = vrsqrt.pop %v650
    %v662 = vmul.f32 %v661, %v650
    %v663 = vmul.f32 %v662, %v661
    %v664 = vmul.f32 0.5, %v663
    %v665 = vsub.f32 1.5, %v664
    %v666 = vmul.f32 %v661, %v665
    %vm667 = vweird.f32 %v650
    %vm668 = vweird.f32 %v661
    %vm669 = vmor %vm667, %vm668
    %v670 = vsel %vm669, %v661, %v666
    %v671 = vmul.f32 %v637, %v660
    %v672 = vmul.f32 %v638, %v670
    %v673 = vperm.slane %v61, 1
    %v674 = vmul.f32 %v671, %v673
    %v675 = vmul.f32 %v672, %v673
    %v676 = vperm.slane %v61, 2
    %v677 = vadd.f32 %v674, %v676
    %v678 = vadd.f32 %v675, %v676
    %v679 = vld [vmem:[#allocation5] sm:$0xff]
    %v680 = vld [vmem:[#allocation5 + $0x8] sm:$0xff]
    %v681 = vld [vmem:[#allocation5 + $0x10] sm:$0xff]
    %v682 = vperm.slane %v61, 3
    %v684 = vsel %vm69, %v677, 0
    %v687 = vsel %vm69, %v678, 0
    %689 = vmatpush.msra.mxu0 0.0
    %690 = vmatpush.msra.mxu0 0.0
    %691 = vmatpush.msra.mxu0 0.0
    %692 = vmatpush.msra.mxu0 0.0
    %693 = vmatpush.msra.mxu0 0.0
    %694 = vmatpush.msra.mxu0 0.0
    %695 = vmatpush.msra.mxu0 0.0
    %696 = vmatpush.msra.mxu0 0.0
    %697 = vmatpush.msra.mxu0 0.0
    %698 = vmatpush.msra.mxu0 0.0
    %699 = vmatpush.msra.mxu0 0.0
    %700 = vmatpush.msra.mxu0 0.0
    %701 = vmatpush.msra.mxu0 0.0
    %702 = vmatpush.msra.mxu0 %v681
    %703 = vmatpush.msra.mxu0 %v680
    %704 = vmatpush.msra.mxu0 %v679
    %705 = vmatmul.f32.gmra.mxu0 %v684
    %v706 = vpop.f32.mrf.mxu0
    %v707 = vadd.f32 %v682, %v706
    %708 = vmatmul.f32.gmra.mxu0 %v687
    %v709 = vpop.f32.mrf.mxu0
    %v710 = vadd.f32 %v682, %v709
    %711 = vdwg.mxu0
    %v712 = vmax.f32 %v707, 0.0
    %v713 = vmax.f32 %v710, 0.0
    %v714 = vld [vmem:[%s5] sm:$0xff]
    %v715 = vld [vmem:[%s5 + $0x8] sm:$0xff]
    %v716 = vld [vmem:[%s5 + $0x10] sm:$0xff]
    %v717 = vld [vmem:[%s5 + $0x18] sm:$0xff]
    %v718 = vperm.slane %v61, 4
    %vm719 = vcmask 261120
    %v721 = vsel %vm719, %v712, 0
    %v724 = vsel %vm719, %v713, 0
    %726 = vmatpush.msra.mxu0 0.0
    %727 = vmatpush.msra.mxu0 0.0
    %728 = vmatpush.msra.mxu0 0.0
    %729 = vmatpush.msra.mxu0 0.0
    %730 = vmatpush.msra.mxu0 0.0
    %731 = vmatpush.msra.mxu0 0.0
    %732 = vmatpush.msra.mxu0 0.0
    %733 = vmatpush.msra.mxu0 0.0
    %734 = vmatpush.msra.mxu0 0.0
    %735 = vmatpush.msra.mxu0 0.0
    %736 = vmatpush.msra.mxu0 0.0
    %737 = vmatpush.msra.mxu0 0.0
    %738 = vmatpush.msra.mxu0 %v717
    %739 = vmatpush.msra.mxu0 %v716
    %740 = vmatpush.msra.mxu0 %v715
    %741 = vmatpush.msra.mxu0 %v714
    %742 = vmatmul.f32.gmra.mxu0 %v721
    %v743 = vpop.f32.mrf.mxu0
    %v744 = vadd.f32 %v718, %v743
    %745 = vmatmul.f32.gmra.mxu0 %v724
    %v746 = vpop.f32.mrf.mxu0
    %v747 = vadd.f32 %v718, %v746
    %748 = vdwg.mxu0
    %v749 = vadd.f32 %v677, %v744
    %v750 = vadd.f32 %v678, %v747
    %v751 = vsel %vm69, %v749, 0.0
    %752 = vadd.xlane.f32.xlu0 %v751
    %v753 = vpop.xlane.xlu0 %752
    %v754 = vsel %vm69, %v750, 0.0
    %755 = vadd.xlane.f32.xlu0 %v754
    %v756 = vpop.xlane.xlu0 %755
    %v757 = vmul.f32 %v753, %v634
    %v758 = vmul.f32 %v756, %v634
    %v759 = vsub.f32 %v749, %v757
    %v760 = vsub.f32 %v750, %v758
    %v761 = vmul.f32 %v759, %v759
    %v762 = vmul.f32 %v760, %v760
    %v763 = vsel %vm69, %v761, 0.0
    %764 = vadd.xlane.f32.xlu0 %v763
    %v765 = vpop.xlane.xlu0 %764
    %v766 = vsel %vm69, %v762, 0.0
    %767 = vadd.xlane.f32.xlu0 %v766
    %v768 = vpop.xlane.xlu0 %767
    %v769 = vmul.f32 %v765, %v634
    %v770 = vmul.f32 %v768, %v634
    %v771 = vadd.f32 %v769, 1e-05
    %v772 = vadd.f32 %v770, 1e-05
    %v773 = vrsqrt.pop %v771
    %v774 = vmul.f32 %v773, %v771
    %v775 = vmul.f32 %v774, %v773
    %v776 = vmul.f32 0.5, %v775
    %v777 = vsub.f32 1.5, %v776
    %v778 = vmul.f32 %v773, %v777
    %vm779 = vweird.f32 %v771
    %vm780 = vweird.f32 %v773
    %vm781 = vmor %vm779, %vm780
    %v782 = vsel %vm781, %v773, %v778
    %v783 = vrsqrt.pop %v772
    %v784 = vmul.f32 %v783, %v772
    %v785 = vmul.f32 %v784, %v783
    %v786 = vmul.f32 0.5, %v785
    %v787 = vsub.f32 1.5, %v786
    %v788 = vmul.f32 %v783, %v787
    %vm789 = vweird.f32 %v772
    %vm790 = vweird.f32 %v783
    %vm791 = vmor %vm789, %vm790
    %v792 = vsel %vm791, %v783, %v788
    %v793 = vmul.f32 %v759, %v782
    %v794 = vmul.f32 %v760, %v792
    %v795 = vperm.slane %v61, 5
    %v796 = vmul.f32 %v793, %v795
    %v797 = vmul.f32 %v794, %v795
    %v798 = vperm.slane %v61, 6
    %v799 = vadd.f32 %v796, %v798
    %v800 = vadd.f32 %v797, %v798
    %801 = vst.msk [vmem:[#allocation7] sm:$0xff] %vm69, %v799
    %802 = vst.msk [vmem:[#allocation7 + $0x8] sm:$0xff] %vm69, %v800
    // Predicated region
    $region38: #{transformer_block.1} parent=1 // pred_check
      _
    $region39: #{transformer_block.1} parent=1 // pred_check_branch
      %804 = sbr.rel (0) target = $region41
    $region40: #{transformer_block.1} parent=1 // pred_region
      %806 = vsyncadd [#allocation4], 0
      %s807 = sshll.u32 [#allocation7], 4
      %s808 = int_to_ptr.vmem [resolvable:$true] %s807
      %s809 = sshll.u32 %s7, 4
      %s810 = int_to_ptr.hbm [resolvable:$true] %s809
      %815 = dma.vmem_to_hbm [thread:$0]  %s808, 256, %s810, [#allocation4], 128, 128, 8
    $region41: #{transformer_block.1} parent=1 // pred_fallthru
      _
    // Predicated region
    $region42: #{transformer_block.1} parent=1 // pred_check
      _
    $region43: #{transformer_block.1} parent=1 // pred_check_branch
      %817 = sbr.rel (0) target = $region45
    $region44: #{transformer_block.1} parent=1 // pred_region
      %819 = dma.done [#allocation4], 256
    $region45: #{transformer_block.1} parent=1 // pred_fallthru
      _
    %820 = vsyncpa [#allocation3], 1
    %821 = vsyncpa [#allocation6], 1
    %822 = vsyncpa [#allocation4], 1

</llo_original>
